<compile_context>
chip_gen: v6e
topology: v6e:2x2x1
jax: 0.10.0
libtpu: 0.0.40
codegen_flags: <defaults>
</compile_context>

<pallas_src>
import jax
import jax.numpy as jnp
from jax.experimental import pallas as pl
from jax.experimental.pallas import tpu as pltpu


def _identity_kernel(x_ref, o_ref):
    # Straight VMEM tile copy — purely HBM-bandwidth bound, no extra VPU work.
    o_ref[...] = x_ref[...]


_MAX_COLS = 1024                      # 8 full 128-lane vregs wide
_MAX_TM = 512                         # rows per tile
_BLOCK_BYTES_BUDGET = 2 * 1024 * 1024  # ~2 MiB/block -> ~8 MiB pipelined


def _lane_dense_2d(total_elems: int):
    """Pick (rows, cols) with cols a multiple of 128 (lane-dense) when possible."""
    if total_elems % 128 != 0:
        # Tiny / odd-sized tensors: single full block (legal: equals full dims).
        return 1, total_elems
    cols = 128
    while cols * 2 <= _MAX_COLS and total_elems % (cols * 2) == 0:
        cols *= 2
    return total_elems // cols, cols


def _pick_tile_rows(rows: int, cols: int, itemsize: int) -> int:
    """Largest row-tile (multiple of 8, <= budget) that evenly divides `rows`."""
    if rows <= 8:
        return rows
    max_rows_by_bytes = max(8, _BLOCK_BYTES_BUDGET // (cols * itemsize))
    tm_cap = min(_MAX_TM, max_rows_by_bytes)
    for t in (512, 256, 128, 64, 32, 16, 8):
        if t <= tm_cap and rows % t == 0:
            return t
    return rows  # fall back to a single full-extent block


def start_block_forward(x, *, name: str = "block", num_repeats: int = 1,
                        materialize: bool = True):
    """Pallas equivalent of StartBlock.forward: returns x unchanged.

    `name` / `num_repeats` are metadata only (as in the PyTorch module).
    materialize=False is the zero-cost identity (just return x); True routes
    through the aliased, tiled Pallas copy kernel.
    """
    if num_repeats < 1:
        raise ValueError(f"num_repeats must be >= 1, got {num_repeats}")
    if not materialize:
        return x  # the true identity: no HBM round trip at all

    orig_shape = x.shape
    total = 1
    for d in orig_shape:
        total *= d
    if total == 0:
        return x  # nothing to copy

    rows, cols = _lane_dense_2d(total)
    x2d = x.reshape(rows, cols)
    tm = _pick_tile_rows(rows, cols, x2d.dtype.itemsize)

    out2d = pl.pallas_call(
        _identity_kernel,
        out_shape=jax.ShapeDtypeStruct((rows, cols), x2d.dtype),
        grid_spec=pltpu.PrefetchScalarGridSpec(
            num_scalar_prefetch=0,
            grid=(pl.cdiv(rows, tm),),
            in_specs=[pl.BlockSpec((tm, cols), lambda i: (i, 0))],
            out_specs=pl.BlockSpec((tm, cols), lambda i: (i, 0)),
        ),
        compiler_params=pltpu.CompilerParams(
            dimension_semantics=("parallel",),
        ),
        # Output aliases the input buffer: no extra HBM allocation for an
        # identity result.
        input_output_aliases={0: 0},
    )(x2d)

    return out2d.reshape(orig_shape)


if __name__ == "__main__":
    key = jax.random.PRNGKey(0)
    # NCHW input consistent with a typical conv-block context.
    x = jax.random.normal(key, (2, 4, 16, 16), dtype=jnp.float32)

    # Zero-cost path (what a real pipeline should use for an identity block).
    y_pass = start_block_forward(x, name="demo_block", num_repeats=2,
                                 materialize=False)
    assert y_pass is x

    # Pallas kernel path (forced materialization through aliased, tiled copy).
    y = start_block_forward(x, name="demo_block", num_repeats=2)
    y = jax.block_until_ready(y)

    assert y.shape == x.shape and y.dtype == x.dtype
    assert bool(jnp.all(y == x))  # exact identity

    print("KERNEL_OK")
</pallas_src>

<mosaic_0001>
module attributes {stable_mosaic.version = 11 : i64} {
  func.func @_identity_kernel(%arg0: i32, %arg1: memref<2x1024xf32, #tpu.memory_space<vmem>>, %arg2: memref<2x1024xf32, #tpu.memory_space<vmem>>) attributes {dimension_semantics = [#tpu.dimension_semantics<parallel>], iteration_bounds = array<i64: 1>, scalar_prefetch = 0 : i64, scratch_operands = 0 : i64, tpu.core_type = #tpu.core_type<tc>, window_params = [{transform_indices = @transform_0, window_bounds = array<i64: 2, 1024>}, {transform_indices = @transform_1, window_bounds = array<i64: 2, 1024>}]} {
    %c0 = arith.constant 0 : index
    %c0_0 = arith.constant 0 : index
    %0 = vector.load %arg1[%c0, %c0_0] : memref<2x1024xf32, #tpu.memory_space<vmem>>, vector<2x1024xf32>
    %c0_1 = arith.constant 0 : index
    %c0_2 = arith.constant 0 : index
    %1 = vector.load %arg2[%c0_1, %c0_2] : memref<2x1024xf32, #tpu.memory_space<vmem>>, vector<2x1024xf32>
    tpu.vector_store %arg2[%c0_1, %c0_2], %0 {strides = array<i32>} : memref<2x1024xf32, #tpu.memory_space<vmem>>, vector<2x1024xf32>,
    return
  }
  func.func @transform_0(%arg0: i32) -> (i32, i32) {
    %c0_i32 = arith.constant 0 : i32
    %c0_i32_0 = arith.constant 0 : i32
    return %arg0, %c0_i32 : i32, i32
  }
  func.func @transform_1(%arg0: i32) -> (i32, i32) {
    %c0_i32 = arith.constant 0 : i32
    %c0_i32_0 = arith.constant 0 : i32
    return %arg0, %c0_i32 : i32, i32
  }
}

</mosaic_0001>

<llo_original>
// kernel: tpu_custom_call.1
$region0: #{tpu_custom_call.1}
  #allocation0 [shape = 'u32[]', space=smem, size = 0x4, offset = 0x4, fixed_abs, tag = 'smem constant byte address 0x4 - core index']
  #allocation1 [shape = 'u32[144,128]{1,0:T(1,128)}', space=vmem, size = 0x12000, scoped, tag = 'internal scratch']
  %s0 = inlined_call_operand.hbm [shape: f32[2,1024], index: 0, kind: input, shape index: {}, may-alias: {0,1}]
  %s1 = inlined_call_operand.hbm [shape: f32[2,1024], index: 1, kind: output, shape index: {}, may-alias: {0,1}]
  %s2 = sld [smem:[#allocation0]]
  $region18: #{tpu_custom_call.1} parent=0
    _
  %s4 = ssub.s32 1, %s2
  %s5 = scalar_select 0, %s4, %s2
  $region1: #{tpu_custom_call.1} parent=0
    #allocation2 [shape = 'u8[8192]{0}', space=vmem, size = 0x2000, scoped, tag = 'input window, operand 0, single buffered']
    #allocation3 [shape = 's32[1]{0}', space=sflag, size = 0x4, scoped, tag = 'scoped memory for tpu_custom_call.1']
    #allocation4 [shape = 's32[1]{0}', space=sflag, size = 0x4, scoped, tag = 'scoped memory for tpu_custom_call.1']
    #allocation5 [shape = 'u8[8192]{0}', space=vmem, size = 0x2000, scoped, tag = 'output window, operand 0, single buffered']
    %6 = vsyncpa [#allocation3], 0
    %7 = vsyncpa [#allocation4], 0
    // Predicated region
    $region2: #{tpu_custom_call.1} parent=1 // pred_check
      _
    $region3: #{tpu_custom_call.1} parent=1 // pred_check_branch
      %9 = sbr.rel (0) target = $region5
    $region4: #{tpu_custom_call.1} parent=1 // pred_region
      %s11 = ssub.s32 256, 256
      %12 = vsyncadd [#allocation3], %s11
      %s14 = sshll.u32 [#allocation2], 4
      %s15 = int_to_ptr.vmem [resolvable:$true] %s14
      %17 = dma.hbm_to_vmem [thread:$0]  %s0, 256, %s15, [#allocation3]
    $region5: #{tpu_custom_call.1} parent=1 // pred_fallthru
      _
    // Predicated region
    $region6: #{tpu_custom_call.1} parent=1 // pred_check
      _
    $region7: #{tpu_custom_call.1} parent=1 // pred_check_branch
      %19 = sbr.rel (0) target = $region9
    $region8: #{tpu_custom_call.1} parent=1 // pred_region
      %20 = dma.done [#allocation3], 256
    $region9: #{tpu_custom_call.1} parent=1 // pred_fallthru
      _
    %v21 = vld [vmem:[#allocation2] sm:$0xff]
    %v22 = vld [vmem:[#allocation2 + $0x8] sm:$0xff]
    %23 = vst [vmem:[#allocation5] sm:$0xff] %v21
    %24 = vst [vmem:[#allocation5 + $0x8] sm:$0xff] %v22
    // Predicated region
    $region10: #{tpu_custom_call.1} parent=1 // pred_check
      _
    $region11: #{tpu_custom_call.1} parent=1 // pred_check_branch
      %26 = sbr.rel (0) target = $region13
    $region12: #{tpu_custom_call.1} parent=1 // pred_region
      %s28 = ssub.s32 256, 256
      %29 = vsyncadd [#allocation4], %s28
      %s31 = sshll.u32 [#allocation5], 4
      %s32 = int_to_ptr.vmem [resolvable:$true] %s31
      %34 = dma.vmem_to_hbm [thread:$0]  %s32, 256, %s1, [#allocation4]
    $region13: #{tpu_custom_call.1} parent=1 // pred_fallthru
      _
    // Predicated region
    $region14: #{tpu_custom_call.1} parent=1 // pred_check
      _
    $region15: #{tpu_custom_call.1} parent=1 // pred_check_branch
      %36 = sbr.rel (0) target = $region17
    $region16: #{tpu_custom_call.1} parent=1 // pred_region
      %37 = dma.done [#allocation4], 256
    $region17: #{tpu_custom_call.1} parent=1 // pred_fallthru
      _
    %38 = vsyncpa [#allocation3], 1
    %39 = vsyncpa [#allocation4], 1

</llo_original>
